<compile_context>
chip_gen: v7x
topology: tpu7x:2x2x1
jax: 0.10.0
libtpu: 0.0.40
codegen_flags: <defaults>
</compile_context>

<pallas_src>
import math
import functools

import jax
import jax.numpy as jnp
from jax import lax
from jax.experimental import pallas as pl
from jax.experimental.pallas import tpu as pltpu


# ----------------------------------------------------------------------------
# Buffer construction (plain JAX glue — mirrors torch __init__)
# ----------------------------------------------------------------------------
def make_positional_encoding_table(max_len, d_model, dtype=jnp.float32):
    position = jnp.arange(max_len, dtype=jnp.float32)[:, None]              # (L, 1)
    div_term = jnp.exp(
        jnp.arange(0, d_model, 2, dtype=jnp.float32) * (-math.log(10000.0) / d_model)
    )                                                                        # (ceil(D/2),)
    angles = position * div_term                                             # (L, ceil(D/2))
    pe = jnp.zeros((max_len, d_model), dtype=jnp.float32)
    pe = pe.at[:, 0::2].set(jnp.sin(angles))
    pe = pe.at[:, 1::2].set(jnp.cos(angles[:, : d_model // 2]))              # odd-D safe
    return pe[:, None, :].astype(dtype)                                      # (L, 1, D)


# ----------------------------------------------------------------------------
# Dropout mask: counter-based hash (portable, tiling-independent)
# ----------------------------------------------------------------------------
_GOLDEN = 0x9E3779B9


def _keep_mask(gidx_i32, seed_i32, drop_threshold):
    """uniform u32 bits from (seed, flat index); keep iff bits >= round(p*2^32)."""
    x = gidx_i32.astype(jnp.uint32) + seed_i32.astype(jnp.uint32) * jnp.uint32(_GOLDEN)
    x = (x ^ (x >> 16)) * jnp.uint32(0x7FEB352D)
    x = (x ^ (x >> 15)) * jnp.uint32(0x846CA68B)
    x = x ^ (x >> 16)
    return x >= jnp.uint32(drop_threshold)


# ----------------------------------------------------------------------------
# Kernels
# ----------------------------------------------------------------------------
def _add_pe_kernel(x_ref, pe_ref, o_ref):
    # pe block is either (ts, 1, D) (broadcasts over batch on sublanes) or the
    # same shape as the x block (flattened path).
    o_ref[...] = (x_ref[...] + pe_ref[...]).astype(o_ref.dtype)


def _add_pe_dropout_3d_kernel(seed_ref, x_ref, pe_ref, o_ref, *,
                              seq_tile, batch, d_model, drop_threshold, inv_keep):
    y = x_ref[...].astype(jnp.float32) + pe_ref[...].astype(jnp.float32)
    shape = x_ref.shape                                    # (ts, B, D), static
    s_idx = pl.program_id(0) * seq_tile + lax.broadcasted_iota(jnp.int32, shape, 0)
    b_idx = lax.broadcasted_iota(jnp.int32, shape, 1)
    d_idx = lax.broadcasted_iota(jnp.int32, shape, 2)
    gidx = (s_idx * batch + b_idx) * d_model + d_idx       # row-major flat index
    keep = _keep_mask(gidx, seed_ref[0], drop_threshold)
    o_ref[...] = jnp.where(keep, y * inv_keep, 0.0).astype(o_ref.dtype)


def _add_pe_dropout_flat_kernel(seed_ref, x_ref, pe_ref, o_ref, *,
                                row_tile, drop_threshold, inv_keep):
    y = x_ref[...].astype(jnp.float32) + pe_ref[...].astype(jnp.float32)
    shape = x_ref.shape                                    # (tr, 128), static
    r_idx = pl.program_id(0) * row_tile + lax.broadcasted_iota(jnp.int32, shape, 0)
    c_idx = lax.broadcasted_iota(jnp.int32, shape, 1)
    gidx = r_idx * shape[1] + c_idx                        # same flat index as 3-D path
    keep = _keep_mask(gidx, seed_ref[0], drop_threshold)
    o_ref[...] = jnp.where(keep, y * inv_keep, 0.0).astype(o_ref.dtype)


# ----------------------------------------------------------------------------
# Tiling heuristic
# ----------------------------------------------------------------------------
def _choose_row_tile(n_rows, streamed_bytes_per_row, *, row_multiple,
                     target_bytes=16 << 20, small_total=2 << 20, min_steps=2,
                     allow_unaligned=False):
    """Largest row tile that divides n_rows, is a multiple of row_multiple,
    keeps the double-buffered streamed footprint under target_bytes and leaves
    at least min_steps grid steps (v7x megacore).  Tiny totals -> one block."""
    total = n_rows * streamed_bytes_per_row
    if total <= small_total:
        return n_rows                                       # single block: no step overhead
    max_rows = max(1, target_bytes // (2 * streamed_bytes_per_row))
    limit = min(n_rows, max_rows, max(1, n_rows // min_steps))
    steps = (row_multiple, 1) if (allow_unaligned and row_multiple > 1) else (row_multiple,)
    for step in steps:
        best = None
        t = step
        while t <= limit:
            if n_rows % t == 0:
                best = t
            t += step
        if best is not None:
            return best
    return n_rows


# ----------------------------------------------------------------------------
# Wrapper
# ----------------------------------------------------------------------------
def positional_encoding(x, pe, *, dropout_p=0.1, training=False, seed=0,
                        seq_tile=None, donate_x=False):
    """dropout(x + pe[:S]) with x seq-first (S, B, D) and pe (max_len, 1, D).

    Notes:
      * donate_x=True aliases x into the output; the caller must not reuse x.
      * the dropout mask comes from a counter-based hash keyed on (seed, flat
        element index) — same inverted-dropout semantics as torch, but not
        bit-identical to torch's RNG stream; it IS reproducible across tilings.
    """
    S, B, D = x.shape
    assert pe.shape[0] >= S and pe.shape[2] == D
    itemsize = jnp.dtype(x.dtype).itemsize
    total_bytes = S * B * D * itemsize
    sublane = max(8, 32 // itemsize)              # 8 f32 / 16 bf16 / 32 int8

    apply_dropout = training and dropout_p > 0.0
    if apply_dropout:
        assert 0.0 < dropout_p < 1.0
        drop_threshold = min(int(round(float(dropout_p) * float(1 << 32))), (1 << 32) - 1)
        inv_keep = 1.0 / (1.0 - float(dropout_p))

    cparams = pltpu.CompilerParams(dimension_semantics=("parallel",),
                                   vmem_limit_bytes=32 << 20)

    # Lane-dense flattened path when D does not fill the 128 lanes.  pe must be
    # pre-broadcast here (extra read stream), so only take it while the whole
    # tensor is small; otherwise the 3-D broadcast path wins on HBM traffic.
    use_flat = (D % 128 != 0) and ((S * B * D) % 128 == 0) \
        and (total_bytes <= (16 << 20)) and (seq_tile is None)

    if use_flat:
        R = (S * B * D) // 128
        x_in = x.reshape(R, 128)
        pe_in = jnp.broadcast_to(pe[:S, 0, :].astype(x.dtype)[:, None, :],
                                 (S, B, D)).reshape(R, 128)
        bytes_per_row = 3 * 128 * itemsize        # x + out + pe all streamed
        tr = _choose_row_tile(R, bytes_per_row, row_multiple=sublane)
        grid = (R // tr,)
        blk = pl.BlockSpec((tr, 128), lambda i, *_: (i, 0))
        in_specs, out_spec = [blk, blk], blk
        out_shape = jax.ShapeDtypeStruct((R, 128), x.dtype)
        kern = (functools.partial(_add_pe_dropout_flat_kernel, row_tile=tr,
                                  drop_threshold=drop_threshold, inv_keep=inv_keep)
                if apply_dropout else _add_pe_kernel)
    else:
        # Main path: 3-D blocks, x (ts, B, D) / pe (ts, 1, D); pe broadcasts
        # over batch inside the kernel (no batch-tiled pe ever hits HBM).
        if seq_tile is None:
            bytes_per_row = (2 * B * D + D) * itemsize      # x + out + un-broadcast pe
            ts = _choose_row_tile(S, bytes_per_row, row_multiple=8, allow_unaligned=True)
        else:
            ts = int(seq_tile)
            assert S % ts == 0, "seq_tile must divide the sequence length"
        x_in = x
        pe_in = pe[:S].astype(x.dtype)                      # (S, 1, D)
        grid = (S // ts,)
        x_spec = pl.BlockSpec((ts, B, D), lambda i, *_: (i, 0, 0))
        pe_spec = pl.BlockSpec((ts, 1, D), lambda i, *_: (i, 0, 0))
        in_specs, out_spec = [x_spec, pe_spec], x_spec
        out_shape = jax.ShapeDtypeStruct((S, B, D), x.dtype)
        kern = (functools.partial(_add_pe_dropout_3d_kernel, seq_tile=ts, batch=B,
                                  d_model=D, drop_threshold=drop_threshold,
                                  inv_keep=inv_keep)
                if apply_dropout else _add_pe_kernel)

    if apply_dropout:
        seed_arr = jnp.asarray([seed], dtype=jnp.int32)
        out = pl.pallas_call(
            kern, out_shape=out_shape,
            grid_spec=pltpu.PrefetchScalarGridSpec(
                num_scalar_prefetch=1, grid=grid,
                in_specs=in_specs, out_specs=out_spec),
            compiler_params=cparams,
            input_output_aliases=({1: 0} if donate_x else {}),   # x is operand 1 (after seed)
        )(seed_arr, x_in, pe_in)
    else:
        out = pl.pallas_call(
            kern, out_shape=out_shape,
            grid_spec=pltpu.PrefetchScalarGridSpec(
                num_scalar_prefetch=0, grid=grid,
                in_specs=in_specs, out_specs=out_spec),
            compiler_params=cparams,
            input_output_aliases=({0: 0} if donate_x else {}),
        )(x_in, pe_in)

    return out.reshape(S, B, D)


# ----------------------------------------------------------------------------
# Main
# ----------------------------------------------------------------------------
if __name__ == "__main__":
    key = jax.random.PRNGKey(0)
    k1, k2 = jax.random.split(key)
    p = 0.1

    # Config 1: small d_model (D=32) -> lane-dense flattened path.
    S, B, D, MAX_LEN = 128, 2, 32, 256
    x = jax.random.normal(k1, (S, B, D), dtype=jnp.float32)
    pe = make_positional_encoding_table(MAX_LEN, D)                 # (MAX_LEN, 1, D)
    ref = x + pe[:S]

    # Eval-mode forward (dropout is identity, as in torch .eval()).
    out = jax.block_until_ready(positional_encoding(x, pe, dropout_p=p, training=False))
    assert out.shape == (S, B, D) and out.dtype == x.dtype
    assert jnp.allclose(out, ref, atol=1e-6, rtol=1e-6), "eval-path mismatch vs reference"

    # Train-mode forward: inverted dropout of (x + pe[:S]).
    out_tr = jax.block_until_ready(
        positional_encoding(x, pe, dropout_p=p, training=True, seed=1234))
    kept = out_tr != 0.0
    assert jnp.allclose(jnp.where(kept, out_tr, 0.0),
                        jnp.where(kept, ref / (1.0 - p), 0.0),
                        atol=1e-5, rtol=1e-5), "train-path kept values mismatch"
    drop_frac = 1.0 - float(jnp.mean(kept))
    assert 0.02 < drop_frac < 0.25, f"dropout fraction {drop_frac} not near p={p}"

    # Config 2: D=128 -> 3-D broadcast path with an explicit 4-step grid.
    S2, B2, D2 = 64, 2, 128
    x2 = jax.random.normal(k2, (S2, B2, D2), dtype=jnp.float32)
    pe2 = make_positional_encoding_table(256, D2)
    ref2 = x2 + pe2[:S2]

    out2 = jax.block_until_ready(
        positional_encoding(x2, pe2, dropout_p=p, training=False, seq_tile=16))
    assert jnp.allclose(out2, ref2, atol=1e-6, rtol=1e-6), "3-D eval-path mismatch"

    out2_tr = jax.block_until_ready(
        positional_encoding(x2, pe2, dropout_p=p, training=True, seed=7, seq_tile=16))
    kept2 = out2_tr != 0.0
    assert jnp.allclose(jnp.where(kept2, out2_tr, 0.0),
                        jnp.where(kept2, ref2 / (1.0 - p), 0.0),
                        atol=1e-5, rtol=1e-5), "3-D train-path kept values mismatch"

    print("KERNEL_OK")
</pallas_src>

<mosaic_0001>
module attributes {stable_mosaic.version = 11 : i64} {
  func.func @_add_pe_kernel(%arg0: i32, %arg1: memref<64x128xf32, #tpu.memory_space<vmem>>, %arg2: memref<64x128xf32, #tpu.memory_space<vmem>>, %arg3: memref<64x128xf32, #tpu.memory_space<vmem>>) attributes {dimension_semantics = [#tpu.dimension_semantics<parallel>], iteration_bounds = array<i64: 1>, scalar_prefetch = 0 : i64, scratch_operands = 0 : i64, tpu.core_type = #tpu.core_type<tc>, window_params = [{transform_indices = @transform_0, window_bounds = array<i64: 64, 128>}, {transform_indices = @transform_1, window_bounds = array<i64: 64, 128>}, {transform_indices = @transform_2, window_bounds = array<i64: 64, 128>}]} {
    %c0 = arith.constant 0 : index
    %c0_0 = arith.constant 0 : index
    %0 = vector.load %arg1[%c0, %c0_0] : memref<64x128xf32, #tpu.memory_space<vmem>>, vector<64x128xf32>
    %c0_1 = arith.constant 0 : index
    %c0_2 = arith.constant 0 : index
    %1 = vector.load %arg2[%c0_1, %c0_2] : memref<64x128xf32, #tpu.memory_space<vmem>>, vector<64x128xf32>
    %2 = arith.addf %0, %1 : vector<64x128xf32>
    %c0_3 = arith.constant 0 : index
    %c0_4 = arith.constant 0 : index
    %3 = vector.load %arg3[%c0_3, %c0_4] : memref<64x128xf32, #tpu.memory_space<vmem>>, vector<64x128xf32>
    tpu.vector_store %arg3[%c0_3, %c0_4], %2 {strides = array<i32>} : memref<64x128xf32, #tpu.memory_space<vmem>>, vector<64x128xf32>,
    return
  }
  func.func @transform_0(%arg0: i32) -> (i32, i32) {
    %c0_i32 = arith.constant 0 : i32
    %c0_i32_0 = arith.constant 0 : i32
    return %arg0, %c0_i32 : i32, i32
  }
  func.func @transform_1(%arg0: i32) -> (i32, i32) {
    %c0_i32 = arith.constant 0 : i32
    %c0_i32_0 = arith.constant 0 : i32
    return %arg0, %c0_i32 : i32, i32
  }
  func.func @transform_2(%arg0: i32) -> (i32, i32) {
    %c0_i32 = arith.constant 0 : i32
    %c0_i32_0 = arith.constant 0 : i32
    return %arg0, %c0_i32 : i32, i32
  }
}

</mosaic_0001>

<llo_original>
// kernel: tpu_custom_call.1
$region0: #{tpu_custom_call.1}
  #allocation0 [shape = 'u32[]', space=smem, size = 0x4, offset = 0x4, fixed_abs, tag = 'smem constant byte address 0x4 - core index']
  #allocation1 [shape = 'u32[144,128]{1,0:T(1,128)}', space=vmem, size = 0x12000, scoped, tag = 'internal scratch']
  %s0 = inlined_call_operand.hbm [shape: f32[64,128], index: 0, kind: input, shape index: {}]
  %s1 = inlined_call_operand.hbm [shape: f32[64,128], index: 1, kind: input, shape index: {}]
  %s2 = inlined_call_operand.hbm [shape: f32[64,128], index: 2, kind: output, shape index: {}]
  %s3 = sld [smem:[#allocation0]]
  $region26: #{tpu_custom_call.1} parent=0
    _
  %s5 = ssub.s32 1, %s3
  %s6 = scalar_select 0, %s5, %s3
  $region1: #{tpu_custom_call.1} parent=0
    #allocation2 [shape = 'u8[32768]{0}', space=vmem, size = 0x8000, scoped, tag = 'input window, operand 0, single buffered']
    #allocation3 [shape = 's32[1]{0}', space=sflag, size = 0x4, scoped, tag = 'scoped memory for tpu_custom_call.1']
    #allocation4 [shape = 's32[1]{0}', space=sflag, size = 0x4, scoped, tag = 'scoped memory for tpu_custom_call.1']
    #allocation5 [shape = 'u8[32768]{0}', space=vmem, size = 0x8000, scoped, tag = 'input window, operand 1, single buffered']
    #allocation6 [shape = 's32[1]{0}', space=sflag, size = 0x4, scoped, tag = 'scoped memory for tpu_custom_call.1']
    #allocation7 [shape = 'u8[32768]{0}', space=vmem, size = 0x8000, scoped, tag = 'output window, operand 0, single buffered']
    %7 = vsyncpa [#allocation3], 0
    %8 = vsyncpa [#allocation6], 0
    %9 = vsyncpa [#allocation4], 0
    // Predicated region
    $region2: #{tpu_custom_call.1} parent=1 // pred_check
      _
    $region3: #{tpu_custom_call.1} parent=1 // pred_check_branch
      %11 = sbr.rel (0) target = $region5
    $region4: #{tpu_custom_call.1} parent=1 // pred_region
      %s13 = ssub.s32 1024, 1024
      %14 = vsyncadd [#allocation3], %s13
      %s15 = sshll.u32 [#allocation2], 4
      %s16 = int_to_ptr.vmem [resolvable:$true] %s15
      %21 = dma.hbm_to_vmem [thread:$0]  %s0, 1024, %s16, [#allocation3], 128, 128, 8
    $region5: #{tpu_custom_call.1} parent=1 // pred_fallthru
      _
    // Predicated region
    $region6: #{tpu_custom_call.1} parent=1 // pred_check
      _
    $region7: #{tpu_custom_call.1} parent=1 // pred_check_branch
      %23 = sbr.rel (0) target = $region9
    $region8: #{tpu_custom_call.1} parent=1 // pred_region
      %s25 = ssub.s32 1024, 1024
      %26 = vsyncadd [#allocation6], %s25
      %s27 = sshll.u32 [#allocation5], 4
      %s28 = int_to_ptr.vmem [resolvable:$true] %s27
      %33 = dma.hbm_to_vmem [thread:$0]  %s1, 1024, %s28, [#allocation6], 128, 128, 8
    $region9: #{tpu_custom_call.1} parent=1 // pred_fallthru
      _
    // Predicated region
    $region10: #{tpu_custom_call.1} parent=1 // pred_check
      _
    $region11: #{tpu_custom_call.1} parent=1 // pred_check_branch
      %35 = sbr.rel (0) target = $region13
    $region12: #{tpu_custom_call.1} parent=1 // pred_region
      %36 = dma.done [#allocation3], 1024
    $region13: #{tpu_custom_call.1} parent=1 // pred_fallthru
      _
    // Predicated region
    $region14: #{tpu_custom_call.1} parent=1 // pred_check
      _
    $region15: #{tpu_custom_call.1} parent=1 // pred_check_branch
      %38 = sbr.rel (0) target = $region17
    $region16: #{tpu_custom_call.1} parent=1 // pred_region
      %39 = dma.done [#allocation6], 1024
    $region17: #{tpu_custom_call.1} parent=1 // pred_fallthru
      _
    %v40 = vld [vmem:[#allocation2] sm:$0xff]
    %v41 = vld [vmem:[#allocation2 + $0x8] sm:$0xff]
    %v42 = vld [vmem:[#allocation2 + $0x10] sm:$0xff]
    %v43 = vld [vmem:[#allocation2 + $0x18] sm:$0xff]
    %v44 = vld [vmem:[#allocation2 + $0x20] sm:$0xff]
    %v45 = vld [vmem:[#allocation2 + $0x28] sm:$0xff]
    %v46 = vld [vmem:[#allocation2 + $0x30] sm:$0xff]
    %v47 = vld [vmem:[#allocation2 + $0x38] sm:$0xff]
    %v48 = vld [vmem:[#allocation5] sm:$0xff]
    %v49 = vld [vmem:[#allocation5 + $0x8] sm:$0xff]
    %v50 = vld [vmem:[#allocation5 + $0x10] sm:$0xff]
    %v51 = vld [vmem:[#allocation5 + $0x18] sm:$0xff]
    %v52 = vld [vmem:[#allocation5 + $0x20] sm:$0xff]
    %v53 = vld [vmem:[#allocation5 + $0x28] sm:$0xff]
    %v54 = vld [vmem:[#allocation5 + $0x30] sm:$0xff]
    %v55 = vld [vmem:[#allocation5 + $0x38] sm:$0xff]
    %v56 = vadd.f32 %v40, %v48
    %v57 = vadd.f32 %v41, %v49
    %v58 = vadd.f32 %v42, %v50
    %v59 = vadd.f32 %v43, %v51
    %v60 = vadd.f32 %v44, %v52
    %v61 = vadd.f32 %v45, %v53
    %v62 = vadd.f32 %v46, %v54
    %v63 = vadd.f32 %v47, %v55
    %64 = vst [vmem:[#allocation7] sm:$0xff] %v56
    %65 = vst [vmem:[#allocation7 + $0x8] sm:$0xff] %v57
    %66 = vst [vmem:[#allocation7 + $0x10] sm:$0xff] %v58
    %67 = vst [vmem:[#allocation7 + $0x18] sm:$0xff] %v59
    %68 = vst [vmem:[#allocation7 + $0x20] sm:$0xff] %v60
    %69 = vst [vmem:[#allocation7 + $0x28] sm:$0xff] %v61
    %70 = vst [vmem:[#allocation7 + $0x30] sm:$0xff] %v62
    %71 = vst [vmem:[#allocation7 + $0x38] sm:$0xff] %v63
    // Predicated region
    $region18: #{tpu_custom_call.1} parent=1 // pred_check
      _
    $region19: #{tpu_custom_call.1} parent=1 // pred_check_branch
      %73 = sbr.rel (0) target = $region21
    $region20: #{tpu_custom_call.1} parent=1 // pred_region
      %s75 = ssub.s32 1024, 1024
      %76 = vsyncadd [#allocation4], %s75
      %s77 = sshll.u32 [#allocation7], 4
      %s78 = int_to_ptr.vmem [resolvable:$true] %s77
      %83 = dma.vmem_to_hbm [thread:$0]  %s78, 1024, %s2, [#allocation4], 128, 128, 8
    $region21: #{tpu_custom_call.1} parent=1 // pred_fallthru
      _
    // Predicated region
    $region22: #{tpu_custom_call.1} parent=1 // pred_check
      _
    $region23: #{tpu_custom_call.1} parent=1 // pred_check_branch
      %85 = sbr.rel (0) target = $region25
    $region24: #{tpu_custom_call.1} parent=1 // pred_region
      %86 = dma.done [#allocation4], 1024
    $region25: #{tpu_custom_call.1} parent=1 // pred_fallthru
      _
    %87 = vsyncpa [#allocation3], 1
    %88 = vsyncpa [#allocation6], 1
    %89 = vsyncpa [#allocation4], 1

</llo_original>
